<compile_context>
chip_gen: v7x
topology: tpu7x:2x2x1
jax: 0.10.0
libtpu: 0.0.40
codegen_flags: <defaults>
</compile_context>

<pallas_src>
import functools

import jax
import jax.numpy as jnp
from jax.experimental import pallas as pl


LANE = 128      # lane width: pad feature / node dims to a multiple of this
SUBLANE = 8     # sublane width: pad graph-count dim to a multiple of this


def _round_up(n, m):
    return ((n + m - 1) // m) * m


def _full_spec(shape):
    # Single-block spec: block == whole (padded) array.
    return pl.BlockSpec(shape, lambda: (0,) * len(shape))


# ----------------------------------------------------------------------------
# Fused Pallas kernel: the entire forward pass in one pallas_call.
# ----------------------------------------------------------------------------
def fused_net_kernel(*refs, num_layers, graph_prediction):
    if graph_prediction:
        a_ref, x_ref, w_ref, b_ref, pool_ref, o_ref = refs
    else:
        a_ref, x_ref, w_ref, b_ref, o_ref = refs
        pool_ref = None

    a = a_ref[...]                         # (Np, Np) bf16  -- normalized adjacency
    h = x_ref[...]                         # (Np, P)  bf16  -- node features
    z = None
    for i in range(num_layers):            # static unroll; h stays in VMEM/vregs
        # Aggregate first: (A_hat @ h) @ W  (fewer FLOPs when F < H).
        agg = jnp.dot(a, h, preferred_element_type=jnp.float32)        # MXU, f32 acc
        z = jnp.dot(agg.astype(jnp.bfloat16), w_ref[i],
                    preferred_element_type=jnp.float32)                 # MXU, f32 acc
        z = z + b_ref[i]                                                # (1, P) f32 bias
        if i < num_layers - 1:
            z = jnp.maximum(z, 0.0)                                     # relu (not last)
        h = z.astype(jnp.bfloat16)

    if graph_prediction:
        # sigmoid(x) = 1 / (1 + exp(-x)) on the EUP (exp + approx reciprocal).
        s = pl.reciprocal(1.0 + jnp.exp(-z), approx=True)               # f32
        o_ref[...] = jnp.dot(pool_ref[...], s.astype(jnp.bfloat16),
                             preferred_element_type=jnp.float32)        # (G, P)
    else:
        o_ref[...] = z


# ----------------------------------------------------------------------------
# Plain-JAX glue: parameters, normalized adjacency, pooling one-hot, padding.
# ----------------------------------------------------------------------------
def make_params(key, num_node_features, num_layers, hidden_dim):
    """Deterministic Glorot-uniform-ish init of the GCN layer weights."""
    params = []
    dims = [num_node_features] + [hidden_dim] * num_layers
    for i in range(num_layers):
        key, wk = jax.random.split(key)
        fan_in, fan_out = dims[i], dims[i + 1]
        limit = jnp.sqrt(6.0 / (fan_in + fan_out))
        w = jax.random.uniform(wk, (fan_in, fan_out), jnp.float32, -limit, limit)
        b = jnp.zeros((fan_out,), jnp.float32)
        params.append((w, b))
    return params


def normalized_adjacency(edge_index, num_nodes):
    """A_hat = D^{-1/2}(A + I)D^{-1/2}, dense, from a [2, E] edge_index.

    Duplicate edges accumulate (matches torch_geometric's gcn_norm behavior)."""
    src, dst = edge_index[0], edge_index[1]
    a = jnp.zeros((num_nodes, num_nodes), jnp.float32)
    a = a.at[dst, src].add(1.0)
    a = a + jnp.eye(num_nodes, dtype=jnp.float32)       # self loops
    deg = a.sum(axis=1)
    d_inv_sqrt = jnp.where(deg > 0, 1.0 / jnp.sqrt(deg), 0.0)
    return d_inv_sqrt[:, None] * a * d_inv_sqrt[None, :]


def pooling_matrix(batch, num_graphs):
    """One-hot [G, N] segment matrix so sum-pool == matmul."""
    return (batch[None, :] == jnp.arange(num_graphs)[:, None]).astype(jnp.float32)


def net_forward(x, edge_index, batch, params, *, graph_prediction, num_graphs):
    """Preprocess (pad + cast to bf16) once, then one fused pallas_call."""
    n, f = x.shape
    hidden = params[0][0].shape[1]
    num_layers = len(params)

    p = _round_up(max(f, hidden), LANE)     # shared lane-dense feature width
    n_pad = _round_up(n, LANE)              # A_hat lane dim / MXU width
    g_pad = _round_up(num_graphs, SUBLANE)

    # --- graph preprocessing: built once, outside the kernel hot path -------
    a_hat = normalized_adjacency(edge_index, n)
    a_bf16 = jnp.zeros((n_pad, n_pad), jnp.float32).at[:n, :n].set(a_hat) \
                .astype(jnp.bfloat16)
    x_bf16 = jnp.zeros((n_pad, p), jnp.float32).at[:n, :f].set(x) \
                .astype(jnp.bfloat16)

    # Stacked, zero-padded layer parameters: W (L, P, P) bf16, b (L, 1, P) f32.
    w_stack = jnp.zeros((num_layers, p, p), jnp.float32)
    b_stack = jnp.zeros((num_layers, 1, p), jnp.float32)
    for i, (w, b) in enumerate(params):
        w_stack = w_stack.at[i, : w.shape[0], : w.shape[1]].set(w)
        b_stack = b_stack.at[i, 0, : b.shape[0]].set(b)
    w_bf16 = w_stack.astype(jnp.bfloat16)

    kernel = functools.partial(
        fused_net_kernel, num_layers=num_layers, graph_prediction=graph_prediction
    )

    if graph_prediction:
        pool = pooling_matrix(batch, num_graphs)
        pool_bf16 = jnp.zeros((g_pad, n_pad), jnp.float32) \
                       .at[:num_graphs, :n].set(pool).astype(jnp.bfloat16)
        out_pad = pl.pallas_call(
            kernel,
            out_shape=jax.ShapeDtypeStruct((g_pad, p), jnp.float32),
            in_specs=[
                _full_spec(a_bf16.shape),
                _full_spec(x_bf16.shape),
                _full_spec(w_bf16.shape),
                _full_spec(b_stack.shape),
                _full_spec(pool_bf16.shape),
            ],
            out_specs=_full_spec((g_pad, p)),
        )(a_bf16, x_bf16, w_bf16, b_stack, pool_bf16)
        return out_pad[:num_graphs, :hidden]
    else:
        out_pad = pl.pallas_call(
            kernel,
            out_shape=jax.ShapeDtypeStruct((n_pad, p), jnp.float32),
            in_specs=[
                _full_spec(a_bf16.shape),
                _full_spec(x_bf16.shape),
                _full_spec(w_bf16.shape),
                _full_spec(b_stack.shape),
            ],
            out_specs=_full_spec((n_pad, p)),
        )(a_bf16, x_bf16, w_bf16, b_stack)
        return out_pad[:n, :hidden]


# ----------------------------------------------------------------------------
if __name__ == "__main__":
    key = jax.random.PRNGKey(0)

    # Small synthetic graph batch: 16 nodes, 4 input features, 2 graphs.
    num_nodes = 16
    num_node_features = 4
    hidden_dim = 32
    num_layers = 3
    num_graphs = 2

    key, kx, ke = jax.random.split(key, 3)
    x = jax.random.normal(kx, (num_nodes, num_node_features), jnp.float32)
    num_edges = 40
    edge_index = jax.random.randint(ke, (2, num_edges), 0, num_nodes, jnp.int32)
    # First 8 nodes -> graph 0, last 8 nodes -> graph 1.
    batch = jnp.concatenate(
        [jnp.zeros((8,), jnp.int32), jnp.ones((8,), jnp.int32)]
    )

    params = make_params(key, num_node_features, num_layers, hidden_dim)

    out = net_forward(
        x, edge_index, batch, params,
        graph_prediction=True, num_graphs=num_graphs,
    )
    out = jax.block_until_ready(out)
    assert out.shape == (num_graphs, hidden_dim)
    assert bool(jnp.all(jnp.isfinite(out)))
    print("KERNEL_OK")
</pallas_src>

<mosaic_0001>
module attributes {stable_mosaic.version = 11 : i64} {
  func.func @fused_net_kernel(%arg0: memref<128x128xbf16, #tpu.memory_space<vmem>>, %arg1: memref<128x128xbf16, #tpu.memory_space<vmem>>, %arg2: memref<3x128x128xbf16, #tpu.memory_space<vmem>>, %arg3: memref<3x1x128xf32, #tpu.memory_space<vmem>>, %arg4: memref<8x128xbf16, #tpu.memory_space<vmem>>, %arg5: memref<8x128xf32, #tpu.memory_space<vmem>>) attributes {dimension_semantics = [], scalar_prefetch = 0 : i64, scratch_operands = 0 : i64, tpu.core_type = #tpu.core_type<tc>} {
    %c0 = arith.constant 0 : index
    %c0_0 = arith.constant 0 : index
    %0 = vector.load %arg0[%c0, %c0_0] : memref<128x128xbf16, #tpu.memory_space<vmem>>, vector<128x128xbf16>
    %c0_1 = arith.constant 0 : index
    %c0_2 = arith.constant 0 : index
    %1 = vector.load %arg1[%c0_1, %c0_2] : memref<128x128xbf16, #tpu.memory_space<vmem>>, vector<128x128xbf16>
    %cst = arith.constant dense<0.000000e+00> : vector<128x128xf32>
    %2 = tpu.matmul %0, %1, %cst {dimension_numbers = #tpu.dot_dimension_numbers<[1], [0], [0], [1], [0, 0, 1, 1], [], []>} : vector<128x128xbf16>, vector<128x128xbf16>, vector<128x128xf32> -> vector<128x128xf32>
    %3 = arith.truncf %2 : vector<128x128xf32> to vector<128x128xbf16>
    %c0_3 = arith.constant 0 : index
    %c0_4 = arith.constant 0 : index
    %c0_5 = arith.constant 0 : index
    %4 = vector.load %arg2[%c0_3, %c0_4, %c0_5] : memref<3x128x128xbf16, #tpu.memory_space<vmem>>, vector<1x128x128xbf16>
    %5 = vector.shape_cast %4 : vector<1x128x128xbf16> to vector<128x128xbf16>
    %cst_6 = arith.constant dense<0.000000e+00> : vector<128x128xf32>
    %6 = tpu.matmul %3, %5, %cst_6 {dimension_numbers = #tpu.dot_dimension_numbers<[1], [0], [0], [1], [0, 0, 1, 1], [], []>} : vector<128x128xbf16>, vector<128x128xbf16>, vector<128x128xf32> -> vector<128x128xf32>
    %c0_7 = arith.constant 0 : index
    %c0_8 = arith.constant 0 : index
    %c0_9 = arith.constant 0 : index
    %7 = vector.load %arg3[%c0_7, %c0_8, %c0_9] : memref<3x1x128xf32, #tpu.memory_space<vmem>>, vector<1x1x128xf32>
    %8 = vector.shape_cast %7 : vector<1x1x128xf32> to vector<1x128xf32>
    %9 = vector.broadcast %8 : vector<1x128xf32> to vector<128x128xf32>
    %10 = arith.addf %6, %9 : vector<128x128xf32>
    %cst_10 = arith.constant 0.000000e+00 : f32
    %11 = vector.broadcast %cst_10 : f32 to vector<128x128xf32>
    %12 = arith.maximumf %10, %11 : vector<128x128xf32>
    %13 = arith.truncf %12 : vector<128x128xf32> to vector<128x128xbf16>
    %cst_11 = arith.constant dense<0.000000e+00> : vector<128x128xf32>
    %14 = tpu.matmul %0, %13, %cst_11 {dimension_numbers = #tpu.dot_dimension_numbers<[1], [0], [0], [1], [0, 0, 1, 1], [], []>} : vector<128x128xbf16>, vector<128x128xbf16>, vector<128x128xf32> -> vector<128x128xf32>
    %15 = arith.truncf %14 : vector<128x128xf32> to vector<128x128xbf16>
    %c1 = arith.constant 1 : index
    %c0_12 = arith.constant 0 : index
    %c0_13 = arith.constant 0 : index
    %16 = vector.load %arg2[%c1, %c0_12, %c0_13] : memref<3x128x128xbf16, #tpu.memory_space<vmem>>, vector<1x128x128xbf16>
    %17 = vector.shape_cast %16 : vector<1x128x128xbf16> to vector<128x128xbf16>
    %cst_14 = arith.constant dense<0.000000e+00> : vector<128x128xf32>
    %18 = tpu.matmul %15, %17, %cst_14 {dimension_numbers = #tpu.dot_dimension_numbers<[1], [0], [0], [1], [0, 0, 1, 1], [], []>} : vector<128x128xbf16>, vector<128x128xbf16>, vector<128x128xf32> -> vector<128x128xf32>
    %c1_15 = arith.constant 1 : index
    %c0_16 = arith.constant 0 : index
    %c0_17 = arith.constant 0 : index
    %19 = vector.load %arg3[%c1_15, %c0_16, %c0_17] : memref<3x1x128xf32, #tpu.memory_space<vmem>>, vector<1x1x128xf32>
    %20 = vector.shape_cast %19 : vector<1x1x128xf32> to vector<1x128xf32>
    %21 = vector.broadcast %20 : vector<1x128xf32> to vector<128x128xf32>
    %22 = arith.addf %18, %21 : vector<128x128xf32>
    %cst_18 = arith.constant 0.000000e+00 : f32
    %23 = vector.broadcast %cst_18 : f32 to vector<128x128xf32>
    %24 = arith.maximumf %22, %23 : vector<128x128xf32>
    %25 = arith.truncf %24 : vector<128x128xf32> to vector<128x128xbf16>
    %cst_19 = arith.constant dense<0.000000e+00> : vector<128x128xf32>
    %26 = tpu.matmul %0, %25, %cst_19 {dimension_numbers = #tpu.dot_dimension_numbers<[1], [0], [0], [1], [0, 0, 1, 1], [], []>} : vector<128x128xbf16>, vector<128x128xbf16>, vector<128x128xf32> -> vector<128x128xf32>
    %27 = arith.truncf %26 : vector<128x128xf32> to vector<128x128xbf16>
    %c2 = arith.constant 2 : index
    %c0_20 = arith.constant 0 : index
    %c0_21 = arith.constant 0 : index
    %28 = vector.load %arg2[%c2, %c0_20, %c0_21] : memref<3x128x128xbf16, #tpu.memory_space<vmem>>, vector<1x128x128xbf16>
    %29 = vector.shape_cast %28 : vector<1x128x128xbf16> to vector<128x128xbf16>
    %cst_22 = arith.constant dense<0.000000e+00> : vector<128x128xf32>
    %30 = tpu.matmul %27, %29, %cst_22 {dimension_numbers = #tpu.dot_dimension_numbers<[1], [0], [0], [1], [0, 0, 1, 1], [], []>} : vector<128x128xbf16>, vector<128x128xbf16>, vector<128x128xf32> -> vector<128x128xf32>
    %c2_23 = arith.constant 2 : index
    %c0_24 = arith.constant 0 : index
    %c0_25 = arith.constant 0 : index
    %31 = vector.load %arg3[%c2_23, %c0_24, %c0_25] : memref<3x1x128xf32, #tpu.memory_space<vmem>>, vector<1x1x128xf32>
    %32 = vector.shape_cast %31 : vector<1x1x128xf32> to vector<1x128xf32>
    %33 = vector.broadcast %32 : vector<1x128xf32> to vector<128x128xf32>
    %34 = arith.addf %30, %33 : vector<128x128xf32>
    %cst_26 = arith.constant 0.000000e+00 : f32
    %35 = vector.broadcast %cst_26 : f32 to vector<128x128xf32>
    %36 = arith.subf %35, %34 : vector<128x128xf32>
    %37 = math.exp %36 : vector<128x128xf32>
    %cst_27 = arith.constant 1.000000e+00 : f32
    %38 = vector.broadcast %cst_27 : f32 to vector<128x128xf32>
    %39 = arith.addf %38, %37 : vector<128x128xf32>
    %40 = tpu.reciprocal %39 {approx = true} : vector<128x128xf32> -> vector<128x128xf32>
    %c0_28 = arith.constant 0 : index
    %c0_29 = arith.constant 0 : index
    %41 = vector.load %arg4[%c0_28, %c0_29] : memref<8x128xbf16, #tpu.memory_space<vmem>>, vector<8x128xbf16>
    %42 = arith.truncf %40 : vector<128x128xf32> to vector<128x128xbf16>
    %cst_30 = arith.constant dense<0.000000e+00> : vector<8x128xf32>
    %43 = tpu.matmul %41, %42, %cst_30 {dimension_numbers = #tpu.dot_dimension_numbers<[1], [0], [0], [1], [0, 0, 1, 1], [], []>} : vector<8x128xbf16>, vector<128x128xbf16>, vector<8x128xf32> -> vector<8x128xf32>
    %c0_31 = arith.constant 0 : index
    %c0_32 = arith.constant 0 : index
    %44 = vector.load %arg5[%c0_31, %c0_32] : memref<8x128xf32, #tpu.memory_space<vmem>>, vector<8x128xf32>
    tpu.vector_store %arg5[%c0_31, %c0_32], %43 {strides = array<i32>} : memref<8x128xf32, #tpu.memory_space<vmem>>, vector<8x128xf32>,
    return
  }
}

</mosaic_0001>

<llo_original>
// kernel: tpu_custom_call.1
$region0: #{tpu_custom_call.1}
  #allocation0 [shape = 'u32[]', space=smem, size = 0x4, offset = 0x4, fixed_abs, tag = 'smem constant byte address 0x4 - core index']
  #allocation1 [shape = 'u32[144,128]{1,0:T(1,128)}', space=vmem, size = 0x12000, scoped, tag = 'internal scratch']
  %s0 = inlined_call_operand.hbm [shape: bf16[128,128], index: 0, kind: input, shape index: {}]
  %s1 = inlined_call_operand.hbm [shape: bf16[128,128], index: 1, kind: input, shape index: {}]
  %s2 = inlined_call_operand.hbm [shape: bf16[3,128,128], index: 2, kind: input, shape index: {}]
  %s3 = inlined_call_operand.vmem [shape: f32[3,1,128], index: 3, kind: input, shape index: {}]
  %s4 = inlined_call_operand.vmem [shape: bf16[8,128], index: 4, kind: input, shape index: {}]
  %s5 = inlined_call_operand.hbm [shape: f32[8,128], index: 5, kind: output, shape index: {}]
  %s6 = sld [smem:[#allocation0]]
  $region42: #{tpu_custom_call.1} parent=0
    _
  %s8 = ssub.s32 1, %s6
  %s9 = scalar_select 0, %s8, %s6
  $region1: #{tpu_custom_call.1} parent=0
    #allocation2 [shape = 'u8[32768]{0}', space=vmem, size = 0x8000, scoped, tag = 'input window, operand 0, single buffered']
    #allocation3 [shape = 's32[1]{0}', space=sflag, size = 0x4, scoped, tag = 'scoped memory for tpu_custom_call.1']
    #allocation4 [shape = 's32[1]{0}', space=sflag, size = 0x4, scoped, tag = 'scoped memory for tpu_custom_call.1']
    #allocation5 [shape = 'u8[32768]{0}', space=vmem, size = 0x8000, scoped, tag = 'input window, operand 1, single buffered']
    #allocation6 [shape = 's32[1]{0}', space=sflag, size = 0x4, scoped, tag = 'scoped memory for tpu_custom_call.1']
    #allocation7 [shape = 'u8[98304]{0}', space=vmem, size = 0x18000, scoped, tag = 'input window, operand 2, single buffered']
    #allocation8 [shape = 'u8[4096]{0}', space=vmem, size = 0x1000, scoped, tag = 'output window, operand 0, single buffered']
    %10 = vsyncpa [#allocation3], 0
    %11 = vsyncpa [#allocation6], 0
    %12 = vsyncpa [#allocation4], 0
    // Predicated region
    $region2: #{tpu_custom_call.1} parent=1 // pred_check
      _
    $region3: #{tpu_custom_call.1} parent=1 // pred_check_branch
      %14 = sbr.rel (0) target = $region5
    $region4: #{tpu_custom_call.1} parent=1 // pred_region
      %s16 = ssub.s32 1024, 1024
      %17 = vsyncadd [#allocation3], %s16
      %s18 = sshll.u32 [#allocation2], 4
      %s19 = int_to_ptr.vmem [resolvable:$true] %s18
      %24 = dma.hbm_to_vmem [thread:$0]  %s0, 1024, %s19, [#allocation3], 64, 64, 4
    $region5: #{tpu_custom_call.1} parent=1 // pred_fallthru
      _
    // Predicated region
    $region6: #{tpu_custom_call.1} parent=1 // pred_check
      _
    $region7: #{tpu_custom_call.1} parent=1 // pred_check_branch
      %26 = sbr.rel (0) target = $region9
    $region8: #{tpu_custom_call.1} parent=1 // pred_region
      %s28 = ssub.s32 1024, 1024
      %29 = vsyncadd [#allocation6], %s28
      %s30 = sshll.u32 [#allocation5], 4
      %s31 = int_to_ptr.vmem [resolvable:$true] %s30
      %36 = dma.hbm_to_vmem [thread:$0]  %s1, 1024, %s31, [#allocation6], 64, 64, 4
    $region9: #{tpu_custom_call.1} parent=1 // pred_fallthru
      _
    // Predicated region
    $region10: #{tpu_custom_call.1} parent=1 // pred_check
      _
    $region11: #{tpu_custom_call.1} parent=1 // pred_check_branch
      %38 = sbr.rel (0) target = $region13
    $region12: #{tpu_custom_call.1} parent=1 // pred_region
      %s40 = ssub.s32 3072, 3072
      %41 = vsyncadd [#allocation6], %s40
      %s42 = sshll.u32 [#allocation7], 4
      %s43 = int_to_ptr.vmem [resolvable:$true] %s42
      %48 = dma.hbm_to_vmem [thread:$0]  %s2, 3072, %s43, [#allocation6], 64, 64, 4
    $region13: #{tpu_custom_call.1} parent=1 // pred_fallthru
      _
    // Predicated region
    $region14: #{tpu_custom_call.1} parent=1 // pred_check
      _
    $region15: #{tpu_custom_call.1} parent=1 // pred_check_branch
      %50 = sbr.rel (0) target = $region17
    $region16: #{tpu_custom_call.1} parent=1 // pred_region
      _
    $region17: #{tpu_custom_call.1} parent=1 // pred_fallthru
      _
    // Predicated region
    $region18: #{tpu_custom_call.1} parent=1 // pred_check
      _
    $region19: #{tpu_custom_call.1} parent=1 // pred_check_branch
      %52 = sbr.rel (0) target = $region21
    $region20: #{tpu_custom_call.1} parent=1 // pred_region
      _
    $region21: #{tpu_custom_call.1} parent=1 // pred_fallthru
      _
    // Predicated region
    $region22: #{tpu_custom_call.1} parent=1 // pred_check
      _
    $region23: #{tpu_custom_call.1} parent=1 // pred_check_branch
      %54 = sbr.rel (0) target = $region25
    $region24: #{tpu_custom_call.1} parent=1 // pred_region
      %55 = dma.done [#allocation3], 1024
    $region25: #{tpu_custom_call.1} parent=1 // pred_fallthru
      _
    // Predicated region
    $region26: #{tpu_custom_call.1} parent=1 // pred_check
      _
    $region27: #{tpu_custom_call.1} parent=1 // pred_check_branch
      %57 = sbr.rel (0) target = $region29
    $region28: #{tpu_custom_call.1} parent=1 // pred_region
      %58 = dma.done [#allocation6], 1024
    $region29: #{tpu_custom_call.1} parent=1 // pred_fallthru
      _
    // Predicated region
    $region30: #{tpu_custom_call.1} parent=1 // pred_check
      _
    $region31: #{tpu_custom_call.1} parent=1 // pred_check_branch
      %60 = sbr.rel (0) target = $region33
    $region32: #{tpu_custom_call.1} parent=1 // pred_region
      %61 = dma.done [#allocation6], 3072
    $region33: #{tpu_custom_call.1} parent=1 // pred_fallthru
      _
    %v63 = vld [vmem:[#allocation2] sm:$0xf]
    %v64 = vld [vmem:[#allocation2 + $0x4] sm:$0xf]
    %v65 = vld [vmem:[#allocation2 + $0x8] sm:$0xf]
    %v66 = vld [vmem:[#allocation2 + $0xc] sm:$0xf]
    %v67 = vld [vmem:[#allocation2 + $0x10] sm:$0xf]
    %v68 = vld [vmem:[#allocation2 + $0x14] sm:$0xf]
    %v69 = vld [vmem:[#allocation2 + $0x18] sm:$0xf]
    %v70 = vld [vmem:[#allocation2 + $0x1c] sm:$0xf]
    %v71 = vld [vmem:[#allocation2 + $0x20] sm:$0xf]
    %v72 = vld [vmem:[#allocation2 + $0x24] sm:$0xf]
    %v73 = vld [vmem:[#allocation2 + $0x28] sm:$0xf]
    %v74 = vld [vmem:[#allocation2 + $0x2c] sm:$0xf]
    %v75 = vld [vmem:[#allocation2 + $0x30] sm:$0xf]
    %v76 = vld [vmem:[#allocation2 + $0x34] sm:$0xf]
    %v77 = vld [vmem:[#allocation2 + $0x38] sm:$0xf]
    %v78 = vld [vmem:[#allocation2 + $0x3c] sm:$0xf]
    %v79 = vld [vmem:[#allocation5] sm:$0xf]
    %v80 = vld [vmem:[#allocation5 + $0x4] sm:$0xf]
    %v81 = vld [vmem:[#allocation5 + $0x8] sm:$0xf]
    %v82 = vld [vmem:[#allocation5 + $0xc] sm:$0xf]
    %v83 = vld [vmem:[#allocation5 + $0x10] sm:$0xf]
    %v84 = vld [vmem:[#allocation5 + $0x14] sm:$0xf]
    %v85 = vld [vmem:[#allocation5 + $0x18] sm:$0xf]
    %v86 = vld [vmem:[#allocation5 + $0x1c] sm:$0xf]
    %v87 = vld [vmem:[#allocation5 + $0x20] sm:$0xf]
    %v88 = vld [vmem:[#allocation5 + $0x24] sm:$0xf]
    %v89 = vld [vmem:[#allocation5 + $0x28] sm:$0xf]
    %v90 = vld [vmem:[#allocation5 + $0x2c] sm:$0xf]
    %v91 = vld [vmem:[#allocation5 + $0x30] sm:$0xf]
    %v92 = vld [vmem:[#allocation5 + $0x34] sm:$0xf]
    %v93 = vld [vmem:[#allocation5 + $0x38] sm:$0xf]
    %v94 = vld [vmem:[#allocation5 + $0x3c] sm:$0xf]
    %v111 = vunpack.c.l.b16 %v63
    %v112 = vunpack.c.l.b16 %v64
    %v113 = vunpack.c.l.b16 %v65
    %v114 = vunpack.c.l.b16 %v66
    %v115 = vunpack.c.l.b16 %v67
    %v116 = vunpack.c.l.b16 %v68
    %v117 = vunpack.c.l.b16 %v69
    %v118 = vunpack.c.l.b16 %v70
    %v119 = vunpack.c.l.b16 %v71
    %v120 = vunpack.c.l.b16 %v72
    %v121 = vunpack.c.l.b16 %v73
    %v122 = vunpack.c.l.b16 %v74
    %v123 = vunpack.c.l.b16 %v75
    %v124 = vunpack.c.l.b16 %v76
    %v125 = vunpack.c.l.b16 %v77
    %v126 = vunpack.c.l.b16 %v78
    %v127 = vpack.c.b16 %v112, %v111
    %v128 = vpack.c.b16 %v114, %v113
    %v129 = vpack.c.b16 %v116, %v115
    %v130 = vpack.c.b16 %v118, %v117
    %v131 = vpack.c.b16 %v120, %v119
    %v132 = vpack.c.b16 %v122, %v121
    %v133 = vpack.c.b16 %v124, %v123
    %v134 = vpack.c.b16 %v126, %v125
    %v159 = vunpack.c.l.b16 %v79
    %v160 = vunpack.c.l.b16 %v80
    %v161 = vunpack.c.l.b16 %v81
    %v162 = vunpack.c.l.b16 %v82
    %v163 = vunpack.c.l.b16 %v83
    %v164 = vunpack.c.l.b16 %v84
    %v165 = vunpack.c.l.b16 %v85
    %v166 = vunpack.c.l.b16 %v86
    %v167 = vunpack.c.l.b16 %v87
    %v168 = vunpack.c.l.b16 %v88
    %v169 = vunpack.c.l.b16 %v89
    %v170 = vunpack.c.l.b16 %v90
    %v171 = vunpack.c.l.b16 %v91
    %v172 = vunpack.c.l.b16 %v92
    %v173 = vunpack.c.l.b16 %v93
    %v174 = vunpack.c.l.b16 %v94
    %v175 = vpack.c.b16 %v160, %v159
    %v176 = vpack.c.b16 %v162, %v161
    %v177 = vpack.c.b16 %v164, %v163
    %v178 = vpack.c.b16 %v166, %v165
    %v179 = vpack.c.b16 %v168, %v167
    %v180 = vpack.c.b16 %v170, %v169
    %v181 = vpack.c.b16 %v172, %v171
    %v182 = vpack.c.b16 %v174, %v173
    %191 = vmatprep.subr.bf16.mxu0 0
    %192 = vmatpush1.bf16.msra.mxu0 %v175
    %193 = vmatprep.subr.bf16.mxu0 0
    %194 = vmatpush1.bf16.msra.mxu0 %v176
    %195 = vmatprep.subr.bf16.mxu0 0
    %196 = vmatpush1.bf16.msra.mxu0 %v177
    %197 = vmatprep.subr.bf16.mxu0 0
    %198 = vmatpush1.bf16.msra.mxu0 %v178
    %199 = vmatprep.subr.bf16.mxu0 0
    %200 = vmatpush1.bf16.msra.mxu0 %v179
    %201 = vmatprep.subr.bf16.mxu0 0
    %202 = vmatpush1.bf16.msra.mxu0 %v180
    %203 = vmatprep.subr.bf16.mxu0 0
    %204 = vmatpush1.bf16.msra.mxu0 %v181
    %205 = vmatprep.subr.bf16.mxu0 0
    %206 = vmatpush1.bf16.msra.mxu0 %v182
    %207 = vmatprep.subr.bf16.mxu0 0
    %208 = vmatpush1.bf16.msra.mxu0 0
    %209 = vmatprep.subr.bf16.mxu0 0
    %210 = vmatpush1.bf16.msra.mxu0 0
    %211 = vmatprep.subr.bf16.mxu0 0
    %212 = vmatpush1.bf16.msra.mxu0 0
    %213 = vmatprep.subr.bf16.mxu0 0
    %214 = vmatpush1.bf16.msra.mxu0 0
    %215 = vmatprep.subr.bf16.mxu0 0
    %216 = vmatpush1.bf16.msra.mxu0 0
    %217 = vmatprep.subr.bf16.mxu0 0
    %218 = vmatpush1.bf16.msra.mxu0 0
    %219 = vmatprep.subr.bf16.mxu0 0
    %220 = vmatpush1.bf16.msra.mxu0 0
    %221 = vmatprep.subr.bf16.mxu0 0
    %222 = vmatpush1.bf16.msra.mxu0 0
    %223 = vmatprep.mubr.bf16.mxu0 0
    %224 = vmatmul.mubr.bf16.gmra.mrb[0].mxu0 %v127
    %v225 = vpop.f32.mrb[0].mxu0
    %v226 = vadd.f32 0.0, %v225
    %v227 = vpop.f32.mrb[0].mxu0
    %v228 = vpop.f32.mrb[0].mxu0
    %v229 = vadd.f32 0.0, %v228
    %v230 = vpop.f32.mrb[0].mxu0
    %231 = vmatprep.mubr.bf16.mxu0 0
    %232 = vmatmul.mubr.bf16.gmra.mrb[0].mxu0 %v128
    %v233 = vpop.f32.mrb[0].mxu0
    %v234 = vadd.f32 0.0, %v233
    %v235 = vpop.f32.mrb[0].mxu0
    %v236 = vpop.f32.mrb[0].mxu0
    %v237 = vadd.f32 0.0, %v236
    %v238 = vpop.f32.mrb[0].mxu0
    %239 = vmatprep.mubr.bf16.mxu0 0
    %240 = vmatmul.mubr.bf16.gmra.mrb[0].mxu0 %v129
    %v241 = vpop.f32.mrb[0].mxu0
    %v242 = vadd.f32 0.0, %v241
    %v243 = vpop.f32.mrb[0].mxu0
    %v244 = vpop.f32.mrb[0].mxu0
    %v245 = vadd.f32 0.0, %v244
    %v246 = vpop.f32.mrb[0].mxu0
    %247 = vmatprep.mubr.bf16.mxu0 0
    %248 = vmatmul.mubr.bf16.gmra.mrb[0].mxu0 %v130
    %v249 = vpop.f32.mrb[0].mxu0
    %v250 = vadd.f32 0.0, %v249
    %v251 = vpop.f32.mrb[0].mxu0
    %v252 = vpop.f32.mrb[0].mxu0
    %v253 = vadd.f32 0.0, %v252
    %v254 = vpop.f32.mrb[0].mxu0
    %255 = vmatprep.mubr.bf16.mxu0 0
    %256 = vmatmul.mubr.bf16.gmra.mrb[0].mxu0 %v131
    %v257 = vpop.f32.mrb[0].mxu0
    %v258 = vadd.f32 0.0, %v257
    %v259 = vpop.f32.mrb[0].mxu0
    %v260 = vpop.f32.mrb[0].mxu0
    %v261 = vadd.f32 0.0, %v260
    %v262 = vpop.f32.mrb[0].mxu0
    %263 = vmatprep.mubr.bf16.mxu0 0
    %264 = vmatmul.mubr.bf16.gmra.mrb[0].mxu0 %v132
    %v265 = vpop.f32.mrb[0].mxu0
    %v266 = vadd.f32 0.0, %v265
    %v267 = vpop.f32.mrb[0].mxu0
    %v268 = vpop.f32.mrb[0].mxu0
    %v269 = vadd.f32 0.0, %v268
    %v270 = vpop.f32.mrb[0].mxu0
    %271 = vmatprep.mubr.bf16.mxu0 0
    %272 = vmatmul.mubr.bf16.gmra.mrb[0].mxu0 %v133
    %v273 = vpop.f32.mrb[0].mxu0
    %v274 = vadd.f32 0.0, %v273
    %v275 = vpop.f32.mrb[0].mxu0
    %v276 = vpop.f32.mrb[0].mxu0
    %v277 = vadd.f32 0.0, %v276
    %v278 = vpop.f32.mrb[0].mxu0
    %279 = vmatprep.mubr.bf16.mxu0 0
    %280 = vmatmul.mubr.bf16.gmra.mrb[0].mxu0 %v134
    %v281 = vpop.f32.mrb[0].mxu0
    %v282 = vadd.f32 0.0, %v281
    %v283 = vpop.f32.mrb[0].mxu0
    %v284 = vpop.f32.mrb[0].mxu0
    %v285 = vadd.f32 0.0, %v284
    %v286 = vpop.f32.mrb[0].mxu0
    %287 = vdwg.mxu0
    %v288 = vpack.c.bf16 %v229, %v226
    %v289 = vpack.c.bf16 %v237, %v234
    %v290 = vpack.c.bf16 %v245, %v242
    %v291 = vpack.c.bf16 %v253, %v250
    %v292 = vpack.c.bf16 %v261, %v258
    %v293 = vpack.c.bf16 %v269, %v266
    %v294 = vpack.c.bf16 %v277, %v274
    %v295 = vpack.c.bf16 %v285, %v282
    %v296 = vld [vmem:[#allocation7] sm:$0xf]
    %v297 = vld [vmem:[#allocation7 + $0x4] sm:$0xf]
    %v298 = vld [vmem:[#allocation7 + $0x8] sm:$0xf]
    %v299 = vld [vmem:[#allocation7 + $0xc] sm:$0xf]
    %v300 = vld [vmem:[#allocation7 + $0x10] sm:$0xf]
    %v301 = vld [vmem:[#allocation7 + $0x14] sm:$0xf]
    %v302 = vld [vmem:[#allocation7 + $0x18] sm:$0xf]
    %v303 = vld [vmem:[#allocation7 + $0x1c] sm:$0xf]
    %v304 = vld [vmem:[#allocation7 + $0x20] sm:$0xf]
    %v305 = vld [vmem:[#allocation7 + $0x24] sm:$0xf]
    %v306 = vld [vmem:[#allocation7 + $0x28] sm:$0xf]
    %v307 = vld [vmem:[#allocation7 + $0x2c] sm:$0xf]
    %v308 = vld [vmem:[#allocation7 + $0x30] sm:$0xf]
    %v309 = vld [vmem:[#allocation7 + $0x34] sm:$0xf]
    %v310 = vld [vmem:[#allocation7 + $0x38] sm:$0xf]
    %v311 = vld [vmem:[#allocation7 + $0x3c] sm:$0xf]
    %v312 = vld [vmem:[%s3] sm:$0x1]
    %v314 = vlaneseq
    %v315 = vshrl.u32 %v314, 7
    %v316 = vsub.s32 0, %v315
    %v317 = vrot.slane %v312, %v316
    %v335 = vunpack.c.l.b16 %v296
    %v336 = vunpack.c.l.b16 %v297
    %v337 = vunpack.c.l.b16 %v298
    %v338 = vunpack.c.l.b16 %v299
    %v339 = vunpack.c.l.b16 %v300
    %v340 = vunpack.c.l.b16 %v301
    %v341 = vunpack.c.l.b16 %v302
    %v342 = vunpack.c.l.b16 %v303
    %v343 = vunpack.c.l.b16 %v304
    %v344 = vunpack.c.l.b16 %v305
    %v345 = vunpack.c.l.b16 %v306
    %v346 = vunpack.c.l.b16 %v307
    %v347 = vunpack.c.l.b16 %v308
    %v348 = vunpack.c.l.b16 %v309
    %v349 = vunpack.c.l.b16 %v310
    %v350 = vunpack.c.l.b16 %v311
    %v351 = vpack.c.b16 %v336, %v335
    %v352 = vpack.c.b16 %v338, %v337
    %v353 = vpack.c.b16 %v340, %v339
    %v354 = vpack.c.b16 %v342, %v341
    %v355 = vpack.c.b16 %v344, %v343
    %v356 = vpack.c.b16 %v346, %v345
    %v357 = vpack.c.b16 %v348, %v347
    %v358 = vpack.c.b16 %v350, %v349
    %367 = vmatprep.subr.bf16.mxu0 0
    %368 = vmatpush1.bf16.msra.mxu0 %v351
    %369 = vmatprep.subr.bf16.mxu0 0
    %370 = vmatpush1.bf16.msra.mxu0 %v352
    %371 = vmatprep.subr.bf16.mxu0 0
    %372 = vmatpush1.bf16.msra.mxu0 %v353
    %373 = vmatprep.subr.bf16.mxu0 0
    %374 = vmatpush1.bf16.msra.mxu0 %v354
    %375 = vmatprep.subr.bf16.mxu0 0
    %376 = vmatpush1.bf16.msra.mxu0 %v355
    %377 = vmatprep.subr.bf16.mxu0 0
    %378 = vmatpush1.bf16.msra.mxu0 %v356
    %379 = vmatprep.subr.bf16.mxu0 0
    %380 = vmatpush1.bf16.msra.mxu0 %v357
    %381 = vmatprep.subr.bf16.mxu0 0
    %382 = vmatpush1.bf16.msra.mxu0 %v358
    %383 = vmatprep.subr.bf16.mxu0 0
    %384 = vmatpush1.bf16.msra.mxu0 0
    %385 = vmatprep.subr.bf16.mxu0 0
    %386 = vmatpush1.bf16.msra.mxu0 0
    %387 = vmatprep.subr.bf16.mxu0 0
    %388 = vmatpush1.bf16.msra.mxu0 0
    %389 = vmatprep.subr.bf16.mxu0 0
    %390 = vmatpush1.bf16.msra.mxu0 0
    %391 = vmatprep.subr.bf16.mxu0 0
    %392 = vmatpush1.bf16.msra.mxu0 0
    %393 = vmatprep.subr.bf16.mxu0 0
    %394 = vmatpush1.bf16.msra.mxu0 0
    %395 = vmatprep.subr.bf16.mxu0 0
    %396 = vmatpush1.bf16.msra.mxu0 0
    %397 = vmatprep.subr.bf16.mxu0 0
    %398 = vmatpush1.bf16.msra.mxu0 0
    %399 = vmatprep.mubr.bf16.mxu0 0
    %400 = vmatmul.mubr.bf16.gmra.mrb[0].mxu0 %v288
    %v401 = vpop.f32.mrb[0].mxu0
    %v402 = vadd.f32 %v317, %v401
    %v403 = vpop.f32.mrb[0].mxu0
    %v404 = vpop.f32.mrb[0].mxu0
    %v405 = vadd.f32 %v317, %v404
    %v406 = vpop.f32.mrb[0].mxu0
    %407 = vmatprep.mubr.bf16.mxu0 0
    %408 = vmatmul.mubr.bf16.gmra.mrb[0].mxu0 %v289
    %v409 = vpop.f32.mrb[0].mxu0
    %v410 = vadd.f32 %v317, %v409
    %v411 = vpop.f32.mrb[0].mxu0
    %v412 = vpop.f32.mrb[0].mxu0
    %v413 = vadd.f32 %v317, %v412
    %v414 = vpop.f32.mrb[0].mxu0
    %415 = vmatprep.mubr.bf16.mxu0 0
    %416 = vmatmul.mubr.bf16.gmra.mrb[0].mxu0 %v290
    %v417 = vpop.f32.mrb[0].mxu0
    %v418 = vadd.f32 %v317, %v417
    %v419 = vpop.f32.mrb[0].mxu0
    %v420 = vpop.f32.mrb[0].mxu0
    %v421 = vadd.f32 %v317, %v420
    %v422 = vpop.f32.mrb[0].mxu0
    %423 = vmatprep.mubr.bf16.mxu0 0
    %424 = vmatmul.mubr.bf16.gmra.mrb[0].mxu0 %v291
    %v425 = vpop.f32.mrb[0].mxu0
    %v426 = vadd.f32 %v317, %v425
    %v427 = vpop.f32.mrb[0].mxu0
    %v428 = vpop.f32.mrb[0].mxu0
    %v429 = vadd.f32 %v317, %v428
    %v430 = vpop.f32.mrb[0].mxu0
    %431 = vmatprep.mubr.bf16.mxu0 0
    %432 = vmatmul.mubr.bf16.gmra.mrb[0].mxu0 %v292
    %v433 = vpop.f32.mrb[0].mxu0
    %v434 = vadd.f32 %v317, %v433
    %v435 = vpop.f32.mrb[0].mxu0
    %v436 = vpop.f32.mrb[0].mxu0
    %v437 = vadd.f32 %v317, %v436
    %v438 = vpop.f32.mrb[0].mxu0
    %439 = vmatprep.mubr.bf16.mxu0 0
    %440 = vmatmul.mubr.bf16.gmra.mrb[0].mxu0 %v293
    %v441 = vpop.f32.mrb[0].mxu0
    %v442 = vadd.f32 %v317, %v441
    %v443 = vpop.f32.mrb[0].mxu0
    %v444 = vpop.f32.mrb[0].mxu0
    %v445 = vadd.f32 %v317, %v444
    %v446 = vpop.f32.mrb[0].mxu0
    %447 = vmatprep.mubr.bf16.mxu0 0
    %448 = vmatmul.mubr.bf16.gmra.mrb[0].mxu0 %v294
    %v449 = vpop.f32.mrb[0].mxu0
    %v450 = vadd.f32 %v317, %v449
    %v451 = vpop.f32.mrb[0].mxu0
    %v452 = vpop.f32.mrb[0].mxu0
    %v453 = vadd.f32 %v317, %v452
    %v454 = vpop.f32.mrb[0].mxu0
    %455 = vmatprep.mubr.bf16.mxu0 0
    %456 = vmatmul.mubr.bf16.gmra.mrb[0].mxu0 %v295
    %v457 = vpop.f32.mrb[0].mxu0
    %v458 = vadd.f32 %v317, %v457
    %v459 = vpop.f32.mrb[0].mxu0
    %v460 = vpop.f32.mrb[0].mxu0
    %v461 = vadd.f32 %v317, %v460
    %v462 = vpop.f32.mrb[0].mxu0
    %463 = vdwg.mxu0
    %v464 = vmax.f32 %v402, 0.0
    %v465 = vmax.f32 %v405, 0.0
    %v466 = vmax.f32 %v410, 0.0
    %v467 = vmax.f32 %v413, 0.0
    %v468 = vmax.f32 %v418, 0.0
    %v469 = vmax.f32 %v421, 0.0
    %v470 = vmax.f32 %v426, 0.0
    %v471 = vmax.f32 %v429, 0.0
    %v472 = vmax.f32 %v434, 0.0
    %v473 = vmax.f32 %v437, 0.0
    %v474 = vmax.f32 %v442, 0.0
    %v475 = vmax.f32 %v445, 0.0
    %v476 = vmax.f32 %v450, 0.0
    %v477 = vmax.f32 %v453, 0.0
    %v478 = vmax.f32 %v458, 0.0
    %v479 = vmax.f32 %v461, 0.0
    %v480 = vpack.c.bf16 %v465, %v464
    %v481 = vpack.c.bf16 %v467, %v466
    %v482 = vpack.c.bf16 %v469, %v468
    %v483 = vpack.c.bf16 %v471, %v470
    %v484 = vpack.c.bf16 %v473, %v472
    %v485 = vpack.c.bf16 %v475, %v474
    %v486 = vpack.c.bf16 %v477, %v476
    %v487 = vpack.c.bf16 %v479, %v478
    %488 = vmatprep.subr.bf16.mxu0 0
    %489 = vmatpush1.bf16.msra.mxu0 %v480
    %490 = vmatprep.subr.bf16.mxu0 0
    %491 = vmatpush1.bf16.msra.mxu0 %v481
    %492 = vmatprep.subr.bf16.mxu0 0
    %493 = vmatpush1.bf16.msra.mxu0 %v482
    %494 = vmatprep.subr.bf16.mxu0 0
    %495 = vmatpush1.bf16.msra.mxu0 %v483
    %496 = vmatprep.subr.bf16.mxu0 0
    %497 = vmatpush1.bf16.msra.mxu0 %v484
    %498 = vmatprep.subr.bf16.mxu0 0
    %499 = vmatpush1.bf16.msra.mxu0 %v485
    %500 = vmatprep.subr.bf16.mxu0 0
    %501 = vmatpush1.bf16.msra.mxu0 %v486
    %502 = vmatprep.subr.bf16.mxu0 0
    %503 = vmatpush1.bf16.msra.mxu0 %v487
    %504 = vmatprep.subr.bf16.mxu0 0
    %505 = vmatpush1.bf16.msra.mxu0 0
    %506 = vmatprep.subr.bf16.mxu0 0
    %507 = vmatpush1.bf16.msra.mxu0 0
    %508 = vmatprep.subr.bf16.mxu0 0
    %509 = vmatpush1.bf16.msra.mxu0 0
    %510 = vmatprep.subr.bf16.mxu0 0
    %511 = vmatpush1.bf16.msra.mxu0 0
    %512 = vmatprep.subr.bf16.mxu0 0
    %513 = vmatpush1.bf16.msra.mxu0 0
    %514 = vmatprep.subr.bf16.mxu0 0
    %515 = vmatpush1.bf16.msra.mxu0 0
    %516 = vmatprep.subr.bf16.mxu0 0
    %517 = vmatpush1.bf16.msra.mxu0 0
    %518 = vmatprep.subr.bf16.mxu0 0
    %519 = vmatpush1.bf16.msra.mxu0 0
    %520 = vmatprep.mubr.bf16.mxu0 0
    %521 = vmatmul.mubr.bf16.gmra.mrb[0].mxu0 %v127
    %v522 = vpop.f32.mrb[0].mxu0
    %v523 = vadd.f32 0.0, %v522
    %v524 = vpop.f32.mrb[0].mxu0
    %v525 = vpop.f32.mrb[0].mxu0
    %v526 = vadd.f32 0.0, %v525
    %v527 = vpop.f32.mrb[0].mxu0
    %528 = vmatprep.mubr.bf16.mxu0 0
    %529 = vmatmul.mubr.bf16.gmra.mrb[0].mxu0 %v128
    %v530 = vpop.f32.mrb[0].mxu0
    %v531 = vadd.f32 0.0, %v530
    %v532 = vpop.f32.mrb[0].mxu0
    %v533 = vpop.f32.mrb[0].mxu0
    %v534 = vadd.f32 0.0, %v533
    %v535 = vpop.f32.mrb[0].mxu0
    %536 = vmatprep.mubr.bf16.mxu0 0
    %537 = vmatmul.mubr.bf16.gmra.mrb[0].mxu0 %v129
    %v538 = vpop.f32.mrb[0].mxu0
    %v539 = vadd.f32 0.0, %v538
    %v540 = vpop.f32.mrb[0].mxu0
    %v541 = vpop.f32.mrb[0].mxu0
    %v542 = vadd.f32 0.0, %v541
    %v543 = vpop.f32.mrb[0].mxu0
    %544 = vmatprep.mubr.bf16.mxu0 0
    %545 = vmatmul.mubr.bf16.gmra.mrb[0].mxu0 %v130
    %v546 = vpop.f32.mrb[0].mxu0
    %v547 = vadd.f32 0.0, %v546
    %v548 = vpop.f32.mrb[0].mxu0
    %v549 = vpop.f32.mrb[0].mxu0
    %v550 = vadd.f32 0.0, %v549
    %v551 = vpop.f32.mrb[0].mxu0
    %552 = vmatprep.mubr.bf16.mxu0 0
    %553 = vmatmul.mubr.bf16.gmra.mrb[0].mxu0 %v131
    %v554 = vpop.f32.mrb[0].mxu0
    %v555 = vadd.f32 0.0, %v554
    %v556 = vpop.f32.mrb[0].mxu0
    %v557 = vpop.f32.mrb[0].mxu0
    %v558 = vadd.f32 0.0, %v557
    %v559 = vpop.f32.mrb[0].mxu0
    %560 = vmatprep.mubr.bf16.mxu0 0
    %561 = vmatmul.mubr.bf16.gmra.mrb[0].mxu0 %v132
    %v562 = vpop.f32.mrb[0].mxu0
    %v563 = vadd.f32 0.0, %v562
    %v564 = vpop.f32.mrb[0].mxu0
    %v565 = vpop.f32.mrb[0].mxu0
    %v566 = vadd.f32 0.0, %v565
    %v567 = vpop.f32.mrb[0].mxu0
    %568 = vmatprep.mubr.bf16.mxu0 0
    %569 = vmatmul.mubr.bf16.gmra.mrb[0].mxu0 %v133
    %v570 = vpop.f32.mrb[0].mxu0
    %v571 = vadd.f32 0.0, %v570
    %v572 = vpop.f32.mrb[0].mxu0
    %v573 = vpop.f32.mrb[0].mxu0
    %v574 = vadd.f32 0.0, %v573
    %v575 = vpop.f32.mrb[0].mxu0
    %576 = vmatprep.mubr.bf16.mxu0 0
    %577 = vmatmul.mubr.bf16.gmra.mrb[0].mxu0 %v134
    %v578 = vpop.f32.mrb[0].mxu0
    %v579 = vadd.f32 0.0, %v578
    %v580 = vpop.f32.mrb[0].mxu0
    %v581 = vpop.f32.mrb[0].mxu0
    %v582 = vadd.f32 0.0, %v581
    %v583 = vpop.f32.mrb[0].mxu0
    %584 = vdwg.mxu0
    %v585 = vpack.c.bf16 %v526, %v523
    %v586 = vpack.c.bf16 %v534, %v531
    %v587 = vpack.c.bf16 %v542, %v539
    %v588 = vpack.c.bf16 %v550, %v547
    %v589 = vpack.c.bf16 %v558, %v555
    %v590 = vpack.c.bf16 %v566, %v563
    %v591 = vpack.c.bf16 %v574, %v571
    %v592 = vpack.c.bf16 %v582, %v579
    %s593 = scalar_lea.vmem [#allocation7], 64
    %v594 = vld [vmem:[%s593] sm:$0xf]
    %v595 = vld [vmem:[%s593 + $0x4] sm:$0xf]
    %v596 = vld [vmem:[%s593 + $0x8] sm:$0xf]
    %v597 = vld [vmem:[%s593 + $0xc] sm:$0xf]
    %v598 = vld [vmem:[%s593 + $0x10] sm:$0xf]
    %v599 = vld [vmem:[%s593 + $0x14] sm:$0xf]
    %v600 = vld [vmem:[%s593 + $0x18] sm:$0xf]
    %v601 = vld [vmem:[%s593 + $0x1c] sm:$0xf]
    %v602 = vld [vmem:[%s593 + $0x20] sm:$0xf]
    %v603 = vld [vmem:[%s593 + $0x24] sm:$0xf]
    %v604 = vld [vmem:[%s593 + $0x28] sm:$0xf]
    %v605 = vld [vmem:[%s593 + $0x2c] sm:$0xf]
    %v606 = vld [vmem:[%s593 + $0x30] sm:$0xf]
    %v607 = vld [vmem:[%s593 + $0x34] sm:$0xf]
    %v608 = vld [vmem:[%s593 + $0x38] sm:$0xf]
    %v609 = vld [vmem:[%s593 + $0x3c] sm:$0xf]
    %s610 = scalar_lea.vmem %s3, 1
    %v611 = vld [vmem:[%s610] sm:$0x1]
    %v613 = vlaneseq
    %v614 = vshrl.u32 %v613, 7
    %v615 = vsub.s32 0, %v614
    %v616 = vrot.slane %v611, %v615
    %v634 = vunpack.c.l.b16 %v594
    %v635 = vunpack.c.l.b16 %v595
    %v636 = vunpack.c.l.b16 %v596
    %v637 = vunpack.c.l.b16 %v597
    %v638 = vunpack.c.l.b16 %v598
    %v639 = vunpack.c.l.b16 %v599
    %v640 = vunpack.c.l.b16 %v600
    %v641 = vunpack.c.l.b16 %v601
    %v642 = vunpack.c.l.b16 %v602
    %v643 = vunpack.c.l.b16 %v603
    %v644 = vunpack.c.l.b16 %v604
    %v645 = vunpack.c.l.b16 %v605
    %v646 = vunpack.c.l.b16 %v606
    %v647 = vunpack.c.l.b16 %v607
    %v648 = vunpack.c.l.b16 %v608
    %v649 = vunpack.c.l.b16 %v609
    %v650 = vpack.c.b16 %v635, %v634
    %v651 = vpack.c.b16 %v637, %v636
    %v652 = vpack.c.b16 %v639, %v638
    %v653 = vpack.c.b16 %v641, %v640
    %v654 = vpack.c.b16 %v643, %v642
    %v655 = vpack.c.b16 %v645, %v644
    %v656 = vpack.c.b16 %v647, %v646
    %v657 = vpack.c.b16 %v649, %v648
    %666 = vmatprep.subr.bf16.mxu0 0
    %667 = vmatpush1.bf16.msra.mxu0 %v650
    %668 = vmatprep.subr.bf16.mxu0 0
    %669 = vmatpush1.bf16.msra.mxu0 %v651
    %670 = vmatprep.subr.bf16.mxu0 0
    %671 = vmatpush1.bf16.msra.mxu0 %v652
    %672 = vmatprep.subr.bf16.mxu0 0
    %673 = vmatpush1.bf16.msra.mxu0 %v653
    %674 = vmatprep.subr.bf16.mxu0 0
    %675 = vmatpush1.bf16.msra.mxu0 %v654
    %676 = vmatprep.subr.bf16.mxu0 0
    %677 = vmatpush1.bf16.msra.mxu0 %v655
    %678 = vmatprep.subr.bf16.mxu0 0
    %679 = vmatpush1.bf16.msra.mxu0 %v656
    %680 = vmatprep.subr.bf16.mxu0 0
    %681 = vmatpush1.bf16.msra.mxu0 %v657
    %682 = vmatprep.subr.bf16.mxu0 0
    %683 = vmatpush1.bf16.msra.mxu0 0
    %684 = vmatprep.subr.bf16.mxu0 0
    %685 = vmatpush1.bf16.msra.mxu0 0
    %686 = vmatprep.subr.bf16.mxu0 0
    %687 = vmatpush1.bf16.msra.mxu0 0
    %688 = vmatprep.subr.bf16.mxu0 0
    %689 = vmatpush1.bf16.msra.mxu0 0
    %690 = vmatprep.subr.bf16.mxu0 0
    %691 = vmatpush1.bf16.msra.mxu0 0
    %692 = vmatprep.subr.bf16.mxu0 0
    %693 = vmatpush1.bf16.msra.mxu0 0
    %694 = vmatprep.subr.bf16.mxu0 0
    %695 = vmatpush1.bf16.msra.mxu0 0
    %696 = vmatprep.subr.bf16.mxu0 0
    %697 = vmatpush1.bf16.msra.mxu0 0
    %698 = vmatprep.mubr.bf16.mxu0 0
    %699 = vmatmul.mubr.bf16.gmra.mrb[0].mxu0 %v585
    %v700 = vpop.f32.mrb[0].mxu0
    %v701 = vadd.f32 %v616, %v700
    %v702 = vpop.f32.mrb[0].mxu0
    %v703 = vpop.f32.mrb[0].mxu0
    %v704 = vadd.f32 %v616, %v703
    %v705 = vpop.f32.mrb[0].mxu0
    %706 = vmatprep.mubr.bf16.mxu0 0
    %707 = vmatmul.mubr.bf16.gmra.mrb[0].mxu0 %v586
    %v708 = vpop.f32.mrb[0].mxu0
    %v709 = vadd.f32 %v616, %v708
    %v710 = vpop.f32.mrb[0].mxu0
    %v711 = vpop.f32.mrb[0].mxu0
    %v712 = vadd.f32 %v616, %v711
    %v713 = vpop.f32.mrb[0].mxu0
    %714 = vmatprep.mubr.bf16.mxu0 0
    %715 = vmatmul.mubr.bf16.gmra.mrb[0].mxu0 %v587
    %v716 = vpop.f32.mrb[0].mxu0
    %v717 = vadd.f32 %v616, %v716
    %v718 = vpop.f32.mrb[0].mxu0
    %v719 = vpop.f32.mrb[0].mxu0
    %v720 = vadd.f32 %v616, %v719
    %v721 = vpop.f32.mrb[0].mxu0
    %722 = vmatprep.mubr.bf16.mxu0 0
    %723 = vmatmul.mubr.bf16.gmra.mrb[0].mxu0 %v588
    %v724 = vpop.f32.mrb[0].mxu0
    %v725 = vadd.f32 %v616, %v724
    %v726 = vpop.f32.mrb[0].mxu0
    %v727 = vpop.f32.mrb[0].mxu0
    %v728 = vadd.f32 %v616, %v727
    %v729 = vpop.f32.mrb[0].mxu0
    %730 = vmatprep.mubr.bf16.mxu0 0
    %731 = vmatmul.mubr.bf16.gmra.mrb[0].mxu0 %v589
    %v732 = vpop.f32.mrb[0].mxu0
    %v733 = vadd.f32 %v616, %v732
    %v734 = vpop.f32.mrb[0].mxu0
    %v735 = vpop.f32.mrb[0].mxu0
    %v736 = vadd.f32 %v616, %v735
    %v737 = vpop.f32.mrb[0].mxu0
    %738 = vmatprep.mubr.bf16.mxu0 0
    %739 = vmatmul.mubr.bf16.gmra.mrb[0].mxu0 %v590
    %v740 = vpop.f32.mrb[0].mxu0
    %v741 = vadd.f32 %v616, %v740
    %v742 = vpop.f32.mrb[0].mxu0
    %v743 = vpop.f32.mrb[0].mxu0
    %v744 = vadd.f32 %v616, %v743
    %v745 = vpop.f32.mrb[0].mxu0
    %746 = vmatprep.mubr.bf16.mxu0 0
    %747 = vmatmul.mubr.bf16.gmra.mrb[0].mxu0 %v591
    %v748 = vpop.f32.mrb[0].mxu0
    %v749 = vadd.f32 %v616, %v748
    %v750 = vpop.f32.mrb[0].mxu0
    %v751 = vpop.f32.mrb[0].mxu0
    %v752 = vadd.f32 %v616, %v751
    %v753 = vpop.f32.mrb[0].mxu0
    %754 = vmatprep.mubr.bf16.mxu0 0
    %755 = vmatmul.mubr.bf16.gmra.mrb[0].mxu0 %v592
    %v756 = vpop.f32.mrb[0].mxu0
    %v757 = vadd.f32 %v616, %v756
    %v758 = vpop.f32.mrb[0].mxu0
    %v759 = vpop.f32.mrb[0].mxu0
    %v760 = vadd.f32 %v616, %v759
    %v761 = vpop.f32.mrb[0].mxu0
    %762 = vdwg.mxu0
    %v763 = vmax.f32 %v701, 0.0
    %v764 = vmax.f32 %v704, 0.0
    %v765 = vmax.f32 %v709, 0.0
    %v766 = vmax.f32 %v712, 0.0
    %v767 = vmax.f32 %v717, 0.0
    %v768 = vmax.f32 %v720, 0.0
    %v769 = vmax.f32 %v725, 0.0
    %v770 = vmax.f32 %v728, 0.0
    %v771 = vmax.f32 %v733, 0.0
    %v772 = vmax.f32 %v736, 0.0
    %v773 = vmax.f32 %v741, 0.0
    %v774 = vmax.f32 %v744, 0.0
    %v775 = vmax.f32 %v749, 0.0
    %v776 = vmax.f32 %v752, 0.0
    %v777 = vmax.f32 %v757, 0.0
    %v778 = vmax.f32 %v760, 0.0
    %v779 = vpack.c.bf16 %v764, %v763
    %v780 = vpack.c.bf16 %v766, %v765
    %v781 = vpack.c.bf16 %v768, %v767
    %v782 = vpack.c.bf16 %v770, %v769
    %v783 = vpack.c.bf16 %v772, %v771
    %v784 = vpack.c.bf16 %v774, %v773
    %v785 = vpack.c.bf16 %v776, %v775
    %v786 = vpack.c.bf16 %v778, %v777
    %787 = vmatprep.subr.bf16.mxu0 0
    %788 = vmatpush1.bf16.msra.mxu0 %v779
    %789 = vmatprep.subr.bf16.mxu0 0
    %790 = vmatpush1.bf16.msra.mxu0 %v780
    %791 = vmatprep.subr.bf16.mxu0 0
    %792 = vmatpush1.bf16.msra.mxu0 %v781
    %793 = vmatprep.subr.bf16.mxu0 0
    %794 = vmatpush1.bf16.msra.mxu0 %v782
    %795 = vmatprep.subr.bf16.mxu0 0
    %796 = vmatpush1.bf16.msra.mxu0 %v783
    %797 = vmatprep.subr.bf16.mxu0 0
    %798 = vmatpush1.bf16.msra.mxu0 %v784
    %799 = vmatprep.subr.bf16.mxu0 0
    %800 = vmatpush1.bf16.msra.mxu0 %v785
    %801 = vmatprep.subr.bf16.mxu0 0
    %802 = vmatpush1.bf16.msra.mxu0 %v786
    %803 = vmatprep.subr.bf16.mxu0 0
    %804 = vmatpush1.bf16.msra.mxu0 0
    %805 = vmatprep.subr.bf16.mxu0 0
    %806 = vmatpush1.bf16.msra.mxu0 0
    %807 = vmatprep.subr.bf16.mxu0 0
    %808 = vmatpush1.bf16.msra.mxu0 0
    %809 = vmatprep.subr.bf16.mxu0 0
    %810 = vmatpush1.bf16.msra.mxu0 0
    %811 = vmatprep.subr.bf16.mxu0 0
    %812 = vmatpush1.bf16.msra.mxu0 0
    %813 = vmatprep.subr.bf16.mxu0 0
    %814 = vmatpush1.bf16.msra.mxu0 0
    %815 = vmatprep.subr.bf16.mxu0 0
    %816 = vmatpush1.bf16.msra.mxu0 0
    %817 = vmatprep.subr.bf16.mxu0 0
    %818 = vmatpush1.bf16.msra.mxu0 0
    %819 = vmatprep.mubr.bf16.mxu0 0
    %820 = vmatmul.mubr.bf16.gmra.mrb[0].mxu0 %v127
    %v821 = vpop.f32.mrb[0].mxu0
    %v822 = vadd.f32 0.0, %v821
    %v823 = vpop.f32.mrb[0].mxu0
    %v824 = vpop.f32.mrb[0].mxu0
    %v825 = vadd.f32 0.0, %v824
    %v826 = vpop.f32.mrb[0].mxu0
    %827 = vmatprep.mubr.bf16.mxu0 0
    %828 = vmatmul.mubr.bf16.gmra.mrb[0].mxu0 %v128
    %v829 = vpop.f32.mrb[0].mxu0
    %v830 = vadd.f32 0.0, %v829
    %v831 = vpop.f32.mrb[0].mxu0
    %v832 = vpop.f32.mrb[0].mxu0
    %v833 = vadd.f32 0.0, %v832
    %v834 = vpop.f32.mrb[0].mxu0
    %835 = vmatprep.mubr.bf16.mxu0 0
    %836 = vmatmul.mubr.bf16.gmra.mrb[0].mxu0 %v129
    %v837 = vpop.f32.mrb[0].mxu0
    %v838 = vadd.f32 0.0, %v837
    %v839 = vpop.f32.mrb[0].mxu0
    %v840 = vpop.f32.mrb[0].mxu0
    %v841 = vadd.f32 0.0, %v840
    %v842 = vpop.f32.mrb[0].mxu0
    %843 = vmatprep.mubr.bf16.mxu0 0
    %844 = vmatmul.mubr.bf16.gmra.mrb[0].mxu0 %v130
    %v845 = vpop.f32.mrb[0].mxu0
    %v846 = vadd.f32 0.0, %v845
    %v847 = vpop.f32.mrb[0].mxu0
    %v848 = vpop.f32.mrb[0].mxu0
    %v849 = vadd.f32 0.0, %v848
    %v850 = vpop.f32.mrb[0].mxu0
    %851 = vmatprep.mubr.bf16.mxu0 0
    %852 = vmatmul.mubr.bf16.gmra.mrb[0].mxu0 %v131
    %v853 = vpop.f32.mrb[0].mxu0
    %v854 = vadd.f32 0.0, %v853
    %v855 = vpop.f32.mrb[0].mxu0
    %v856 = vpop.f32.mrb[0].mxu0
    %v857 = vadd.f32 0.0, %v856
    %v858 = vpop.f32.mrb[0].mxu0
    %859 = vmatprep.mubr.bf16.mxu0 0
    %860 = vmatmul.mubr.bf16.gmra.mrb[0].mxu0 %v132
    %v861 = vpop.f32.mrb[0].mxu0
    %v862 = vadd.f32 0.0, %v861
    %v863 = vpop.f32.mrb[0].mxu0
    %v864 = vpop.f32.mrb[0].mxu0
    %v865 = vadd.f32 0.0, %v864
    %v866 = vpop.f32.mrb[0].mxu0
    %867 = vmatprep.mubr.bf16.mxu0 0
    %868 = vmatmul.mubr.bf16.gmra.mrb[0].mxu0 %v133
    %v869 = vpop.f32.mrb[0].mxu0
    %v870 = vadd.f32 0.0, %v869
    %v871 = vpop.f32.mrb[0].mxu0
    %v872 = vpop.f32.mrb[0].mxu0
    %v873 = vadd.f32 0.0, %v872
    %v874 = vpop.f32.mrb[0].mxu0
    %875 = vmatprep.mubr.bf16.mxu0 0
    %876 = vmatmul.mubr.bf16.gmra.mrb[0].mxu0 %v134
    %v877 = vpop.f32.mrb[0].mxu0
    %v878 = vadd.f32 0.0, %v877
    %v879 = vpop.f32.mrb[0].mxu0
    %v880 = vpop.f32.mrb[0].mxu0
    %v881 = vadd.f32 0.0, %v880
    %v882 = vpop.f32.mrb[0].mxu0
    %883 = vdwg.mxu0
    %v884 = vpack.c.bf16 %v825, %v822
    %v885 = vpack.c.bf16 %v833, %v830
    %v886 = vpack.c.bf16 %v841, %v838
    %v887 = vpack.c.bf16 %v849, %v846
    %v888 = vpack.c.bf16 %v857, %v854
    %v889 = vpack.c.bf16 %v865, %v862
    %v890 = vpack.c.bf16 %v873, %v870
    %v891 = vpack.c.bf16 %v881, %v878
    %s892 = scalar_lea.vmem [#allocation7], 128
    %v893 = vld [vmem:[%s892] sm:$0xf]
    %v894 = vld [vmem:[%s892 + $0x4] sm:$0xf]
    %v895 = vld [vmem:[%s892 + $0x8] sm:$0xf]
    %v896 = vld [vmem:[%s892 + $0xc] sm:$0xf]
    %v897 = vld [vmem:[%s892 + $0x10] sm:$0xf]
    %v898 = vld [vmem:[%s892 + $0x14] sm:$0xf]
    %v899 = vld [vmem:[%s892 + $0x18] sm:$0xf]
    %v900 = vld [vmem:[%s892 + $0x1c] sm:$0xf]
    %v901 = vld [vmem:[%s892 + $0x20] sm:$0xf]
    %v902 = vld [vmem:[%s892 + $0x24] sm:$0xf]
    %v903 = vld [vmem:[%s892 + $0x28] sm:$0xf]
    %v904 = vld [vmem:[%s892 + $0x2c] sm:$0xf]
    %v905 = vld [vmem:[%s892 + $0x30] sm:$0xf]
    %v906 = vld [vmem:[%s892 + $0x34] sm:$0xf]
    %v907 = vld [vmem:[%s892 + $0x38] sm:$0xf]
    %v908 = vld [vmem:[%s892 + $0x3c] sm:$0xf]
    %s909 = scalar_lea.vmem %s3, 2
    %v910 = vld [vmem:[%s909] sm:$0x1]
    %v912 = vlaneseq
    %v913 = vshrl.u32 %v912, 7
    %v914 = vsub.s32 0, %v913
    %v915 = vrot.slane %v910, %v914
    %v933 = vunpack.c.l.b16 %v893
    %v934 = vunpack.c.l.b16 %v894
    %v935 = vunpack.c.l.b16 %v895
    %v936 = vunpack.c.l.b16 %v896
    %v937 = vunpack.c.l.b16 %v897
    %v938 = vunpack.c.l.b16 %v898
    %v939 = vunpack.c.l.b16 %v899
    %v940 = vunpack.c.l.b16 %v900
    %v941 = vunpack.c.l.b16 %v901
    %v942 = vunpack.c.l.b16 %v902
    %v943 = vunpack.c.l.b16 %v903
    %v944 = vunpack.c.l.b16 %v904
    %v945 = vunpack.c.l.b16 %v905
    %v946 = vunpack.c.l.b16 %v906
    %v947 = vunpack.c.l.b16 %v907
    %v948 = vunpack.c.l.b16 %v908
    %v949 = vpack.c.b16 %v934, %v933
    %v950 = vpack.c.b16 %v936, %v935
    %v951 = vpack.c.b16 %v938, %v937
    %v952 = vpack.c.b16 %v940, %v939
    %v953 = vpack.c.b16 %v942, %v941
    %v954 = vpack.c.b16 %v944, %v943
    %v955 = vpack.c.b16 %v946, %v945
    %v956 = vpack.c.b16 %v948, %v947
    %965 = vmatprep.subr.bf16.mxu0 0
    %966 = vmatpush1.bf16.msra.mxu0 %v949
    %967 = vmatprep.subr.bf16.mxu0 0
    %968 = vmatpush1.bf16.msra.mxu0 %v950
    %969 = vmatprep.subr.bf16.mxu0 0
    %970 = vmatpush1.bf16.msra.mxu0 %v951
    %971 = vmatprep.subr.bf16.mxu0 0
    %972 = vmatpush1.bf16.msra.mxu0 %v952
    %973 = vmatprep.subr.bf16.mxu0 0
    %974 = vmatpush1.bf16.msra.mxu0 %v953
    %975 = vmatprep.subr.bf16.mxu0 0
    %976 = vmatpush1.bf16.msra.mxu0 %v954
    %977 = vmatprep.subr.bf16.mxu0 0
    %978 = vmatpush1.bf16.msra.mxu0 %v955
    %979 = vmatprep.subr.bf16.mxu0 0
    %980 = vmatpush1.bf16.msra.mxu0 %v956
    %981 = vmatprep.subr.bf16.mxu0 0
    %982 = vmatpush1.bf16.msra.mxu0 0
    %983 = vmatprep.subr.bf16.mxu0 0
    %984 = vmatpush1.bf16.msra.mxu0 0
    %985 = vmatprep.subr.bf16.mxu0 0
    %986 = vmatpush1.bf16.msra.mxu0 0
    %987 = vmatprep.subr.bf16.mxu0 0
    %988 = vmatpush1.bf16.msra.mxu0 0
    %989 = vmatprep.subr.bf16.mxu0 0
    %990 = vmatpush1.bf16.msra.mxu0 0
    %991 = vmatprep.subr.bf16.mxu0 0
    %992 = vmatpush1.bf16.msra.mxu0 0
    %993 = vmatprep.subr.bf16.mxu0 0
    %994 = vmatpush1.bf16.msra.mxu0 0
    %995 = vmatprep.subr.bf16.mxu0 0
    %996 = vmatpush1.bf16.msra.mxu0 0
    %997 = vmatprep.mubr.bf16.mxu0 0
    %998 = vmatmul.mubr.bf16.gmra.mrb[0].mxu0 %v884
    %v999 = vpop.f32.mrb[0].mxu0
    %v1000 = vadd.f32 %v915, %v999
    %v1001 = vpop.f32.mrb[0].mxu0
    %v1002 = vpop.f32.mrb[0].mxu0
    %v1003 = vadd.f32 %v915, %v1002
    %v1004 = vpop.f32.mrb[0].mxu0
    %1005 = vmatprep.mubr.bf16.mxu0 0
    %1006 = vmatmul.mubr.bf16.gmra.mrb[0].mxu0 %v885
    %v1007 = vpop.f32.mrb[0].mxu0
    %v1008 = vadd.f32 %v915, %v1007
    %v1009 = vpop.f32.mrb[0].mxu0
    %v1010 = vpop.f32.mrb[0].mxu0
    %v1011 = vadd.f32 %v915, %v1010
    %v1012 = vpop.f32.mrb[0].mxu0
    %1013 = vmatprep.mubr.bf16.mxu0 0
    %1014 = vmatmul.mubr.bf16.gmra.mrb[0].mxu0 %v886
    %v1015 = vpop.f32.mrb[0].mxu0
    %v1016 = vadd.f32 %v915, %v1015
    %v1017 = vpop.f32.mrb[0].mxu0
    %v1018 = vpop.f32.mrb[0].mxu0
    %v1019 = vadd.f32 %v915, %v1018
    %v1020 = vpop.f32.mrb[0].mxu0
    %1021 = vmatprep.mubr.bf16.mxu0 0
    %1022 = vmatmul.mubr.bf16.gmra.mrb[0].mxu0 %v887
    %v1023 = vpop.f32.mrb[0].mxu0
    %v1024 = vadd.f32 %v915, %v1023
    %v1025 = vpop.f32.mrb[0].mxu0
    %v1026 = vpop.f32.mrb[0].mxu0
    %v1027 = vadd.f32 %v915, %v1026
    %v1028 = vpop.f32.mrb[0].mxu0
    %1029 = vmatprep.mubr.bf16.mxu0 0
    %1030 = vmatmul.mubr.bf16.gmra.mrb[0].mxu0 %v888
    %v1031 = vpop.f32.mrb[0].mxu0
    %v1032 = vadd.f32 %v915, %v1031
    %v1033 = vpop.f32.mrb[0].mxu0
    %v1034 = vpop.f32.mrb[0].mxu0
    %v1035 = vadd.f32 %v915, %v1034
    %v1036 = vpop.f32.mrb[0].mxu0
    %1037 = vmatprep.mubr.bf16.mxu0 0
    %1038 = vmatmul.mubr.bf16.gmra.mrb[0].mxu0 %v889
    %v1039 = vpop.f32.mrb[0].mxu0
    %v1040 = vadd.f32 %v915, %v1039
    %v1041 = vpop.f32.mrb[0].mxu0
    %v1042 = vpop.f32.mrb[0].mxu0
    %v1043 = vadd.f32 %v915, %v1042
    %v1044 = vpop.f32.mrb[0].mxu0
    %1045 = vmatprep.mubr.bf16.mxu0 0
    %1046 = vmatmul.mubr.bf16.gmra.mrb[0].mxu0 %v890
    %v1047 = vpop.f32.mrb[0].mxu0
    %v1048 = vadd.f32 %v915, %v1047
    %v1049 = vpop.f32.mrb[0].mxu0
    %v1050 = vpop.f32.mrb[0].mxu0
    %v1051 = vadd.f32 %v915, %v1050
    %v1052 = vpop.f32.mrb[0].mxu0
    %1053 = vmatprep.mubr.bf16.mxu0 0
    %1054 = vmatmul.mubr.bf16.gmra.mrb[0].mxu0 %v891
    %v1055 = vpop.f32.mrb[0].mxu0
    %v1056 = vadd.f32 %v915, %v1055
    %v1057 = vpop.f32.mrb[0].mxu0
    %v1058 = vpop.f32.mrb[0].mxu0
    %v1059 = vadd.f32 %v915, %v1058
    %v1060 = vpop.f32.mrb[0].mxu0
    %1061 = vdwg.mxu0
    %v1062 = vsub.f32 0.0, %v1000
    %v1063 = vsub.f32 0.0, %v1003
    %v1064 = vsub.f32 0.0, %v1008
    %v1065 = vsub.f32 0.0, %v1011
    %v1066 = vsub.f32 0.0, %v1016
    %v1067 = vsub.f32 0.0, %v1019
    %v1068 = vsub.f32 0.0, %v1024
    %v1069 = vsub.f32 0.0, %v1027
    %v1070 = vsub.f32 0.0, %v1032
    %v1071 = vsub.f32 0.0, %v1035
    %v1072 = vsub.f32 0.0, %v1040
    %v1073 = vsub.f32 0.0, %v1043
    %v1074 = vsub.f32 0.0, %v1048
    %v1075 = vsub.f32 0.0, %v1051
    %v1076 = vsub.f32 0.0, %v1056
    %v1077 = vsub.f32 0.0, %v1059
    %v1078 = vmul.f32 %v1062, 1.442695
    %v1079 = vpow.pop %v1078
    %v1080 = vmul.f32 %v1063, 1.442695
    %v1081 = vpow.pop %v1080
    %v1082 = vmul.f32 %v1064, 1.442695
    %v1083 = vpow.pop %v1082
    %v1084 = vmul.f32 %v1065, 1.442695
    %v1085 = vpow.pop %v1084
    %v1086 = vmul.f32 %v1066, 1.442695
    %v1087 = vpow.pop %v1086
    %v1088 = vmul.f32 %v1067, 1.442695
    %v1089 = vpow.pop %v1088
    %v1090 = vmul.f32 %v1068, 1.442695
    %v1091 = vpow.pop %v1090
    %v1092 = vmul.f32 %v1069, 1.442695
    %v1093 = vpow.pop %v1092
    %v1094 = vmul.f32 %v1070, 1.442695
    %v1095 = vpow.pop %v1094
    %v1096 = vmul.f32 %v1071, 1.442695
    %v1097 = vpow.pop %v1096
    %v1098 = vmul.f32 %v1072, 1.442695
    %v1099 = vpow.pop %v1098
    %v1100 = vmul.f32 %v1073, 1.442695
    %v1101 = vpow.pop %v1100
    %v1102 = vmul.f32 %v1074, 1.442695
    %v1103 = vpow.pop %v1102
    %v1104 = vmul.f32 %v1075, 1.442695
    %v1105 = vpow.pop %v1104
    %v1106 = vmul.f32 %v1076, 1.442695
    %v1107 = vpow.pop %v1106
    %v1108 = vmul.f32 %v1077, 1.442695
    %v1109 = vpow.pop %v1108
    %v1110 = vadd.f32 %v1079, 1.0
    %v1111 = vadd.f32 %v1081, 1.0
    %v1112 = vadd.f32 %v1083, 1.0
    %v1113 = vadd.f32 %v1085, 1.0
    %v1114 = vadd.f32 %v1087, 1.0
    %v1115 = vadd.f32 %v1089, 1.0
    %v1116 = vadd.f32 %v1091, 1.0
    %v1117 = vadd.f32 %v1093, 1.0
    %v1118 = vadd.f32 %v1095, 1.0
    %v1119 = vadd.f32 %v1097, 1.0
    %v1120 = vadd.f32 %v1099, 1.0
    %v1121 = vadd.f32 %v1101, 1.0
    %v1122 = vadd.f32 %v1103, 1.0
    %v1123 = vadd.f32 %v1105, 1.0
    %v1124 = vadd.f32 %v1107, 1.0
    %v1125 = vadd.f32 %v1109, 1.0
    %v1126 = vrcp.pop %v1110
    %v1127 = vrcp.pop %v1111
    %v1128 = vrcp.pop %v1112
    %v1129 = vrcp.pop %v1113
    %v1130 = vrcp.pop %v1114
    %v1131 = vrcp.pop %v1115
    %v1132 = vrcp.pop %v1116
    %v1133 = vrcp.pop %v1117
    %v1134 = vrcp.pop %v1118
    %v1135 = vrcp.pop %v1119
    %v1136 = vrcp.pop %v1120
    %v1137 = vrcp.pop %v1121
    %v1138 = vrcp.pop %v1122
    %v1139 = vrcp.pop %v1123
    %v1140 = vrcp.pop %v1124
    %v1141 = vrcp.pop %v1125
    %v1142 = vld [vmem:[%s4] sm:$0xf]
    %v1143 = vpack.c.bf16 %v1127, %v1126
    %v1144 = vpack.c.bf16 %v1129, %v1128
    %v1145 = vpack.c.bf16 %v1131, %v1130
    %v1146 = vpack.c.bf16 %v1133, %v1132
    %v1147 = vpack.c.bf16 %v1135, %v1134
    %v1148 = vpack.c.bf16 %v1137, %v1136
    %v1149 = vpack.c.bf16 %v1139, %v1138
    %v1150 = vpack.c.bf16 %v1141, %v1140
    %1151 = vmatprep.subr.bf16.mxu0 0
    %1152 = vmatpush1.bf16.msra.mxu0 %v1143
    %1153 = vmatprep.subr.bf16.mxu0 0
    %1154 = vmatpush1.bf16.msra.mxu0 %v1144
    %1155 = vmatprep.subr.bf16.mxu0 0
    %1156 = vmatpush1.bf16.msra.mxu0 %v1145
    %1157 = vmatprep.subr.bf16.mxu0 0
    %1158 = vmatpush1.bf16.msra.mxu0 %v1146
    %1159 = vmatprep.subr.bf16.mxu0 0
    %1160 = vmatpush1.bf16.msra.mxu0 %v1147
    %1161 = vmatprep.subr.bf16.mxu0 0
    %1162 = vmatpush1.bf16.msra.mxu0 %v1148
    %1163 = vmatprep.subr.bf16.mxu0 0
    %1164 = vmatpush1.bf16.msra.mxu0 %v1149
    %1165 = vmatprep.subr.bf16.mxu0 0
    %1166 = vmatpush1.bf16.msra.mxu0 %v1150
    %1167 = vmatprep.subr.bf16.mxu0 0
    %1168 = vmatpush1.bf16.msra.mxu0 0
    %1169 = vmatprep.subr.bf16.mxu0 0
    %1170 = vmatpush1.bf16.msra.mxu0 0
    %1171 = vmatprep.subr.bf16.mxu0 0
    %1172 = vmatpush1.bf16.msra.mxu0 0
    %1173 = vmatprep.subr.bf16.mxu0 0
    %1174 = vmatpush1.bf16.msra.mxu0 0
    %1175 = vmatprep.subr.bf16.mxu0 0
    %1176 = vmatpush1.bf16.msra.mxu0 0
    %1177 = vmatprep.subr.bf16.mxu0 0
    %1178 = vmatpush1.bf16.msra.mxu0 0
    %1179 = vmatprep.subr.bf16.mxu0 0
    %1180 = vmatpush1.bf16.msra.mxu0 0
    %1181 = vmatprep.subr.bf16.mxu0 0
    %1182 = vmatpush1.bf16.msra.mxu0 0
    %1183 = vmatprep.mubr.bf16.mxu0 0
    %1184 = vmatmul.mubr.bf16.gmra.mrb[0].mxu0 %v1142
    %v1185 = vpop.f32.mrb[0].mxu0
    %v1186 = vadd.f32 0.0, %v1185
    %v1187 = vpop.f32.mrb[0].mxu0
    %v1188 = vpop.f32.mrb[0].mxu0
    %v1189 = vpop.f32.mrb[0].mxu0
    %1190 = vdwg.mxu0
    %1191 = vst [vmem:[#allocation8] sm:$0xff] %v1186
    // Predicated region
    $region34: #{tpu_custom_call.1} parent=1 // pred_check
      _
    $region35: #{tpu_custom_call.1} parent=1 // pred_check_branch
      %1193 = sbr.rel (0) target = $region37
    $region36: #{tpu_custom_call.1} parent=1 // pred_region
      %s1195 = ssub.s32 128, 128
      %1196 = vsyncadd [#allocation4], %s1195
      %s1198 = sshll.u32 [#allocation8], 4
      %s1199 = int_to_ptr.vmem [resolvable:$true] %s1198
      %1201 = dma.vmem_to_hbm [thread:$0]  %s1199, 128, %s5, [#allocation4]
    $region37: #{tpu_custom_call.1} parent=1 // pred_fallthru
      _
    // Predicated region
    $region38: #{tpu_custom_call.1} parent=1 // pred_check
      _
    $region39: #{tpu_custom_call.1} parent=1 // pred_check_branch
      %1203 = sbr.rel (0) target = $region41
    $region40: #{tpu_custom_call.1} parent=1 // pred_region
      %1204 = dma.done [#allocation4], 128
    $region41: #{tpu_custom_call.1} parent=1 // pred_fallthru
      _
    %1205 = vsyncpa [#allocation3], 1
    %1206 = vsyncpa [#allocation6], 1
    %1207 = vsyncpa [#allocation4], 1

</llo_original>
